<compile_context>
chip_gen: v7x
topology: tpu7x:2x2x1
jax: 0.10.0
libtpu: 0.0.40
codegen_flags: <defaults>
</compile_context>

<pallas_src>
import functools
import math

import jax
import jax.numpy as jnp
from jax import lax
from jax.experimental import pallas as pl
from jax.experimental.pallas import tpu as pltpu


# ---------------------------------------------------------------------------
# Pallas kernels
# ---------------------------------------------------------------------------

def _feat_kernel(x_ref, w_ref, h_ref):
    """First feature transform h0 = x @ W0 (rows independent -> row-tiled)."""
    h_ref[...] = jnp.dot(x_ref[...], w_ref[...],
                         preferred_element_type=jnp.float32).astype(h_ref.dtype)


def _prop_kernel(a_ref, h_ref, b_ref, w_next_ref, z_ref, h_next_ref):
    """One GCN propagation stage on a row tile, with the NEXT layer's feature
    transform fused into the epilogue:

        z_tile      = relu(A_tile @ h + b)
        h_next_tile = z_tile @ W_next
    """
    agg = jnp.dot(a_ref[...], h_ref[...], preferred_element_type=jnp.float32)
    z = jnp.maximum(agg + b_ref[...], 0.0).astype(jnp.bfloat16)
    z_ref[...] = z
    h_next_ref[...] = jnp.dot(z, w_next_ref[...],
                              preferred_element_type=jnp.float32).astype(h_next_ref.dtype)


def _decoder_kernel(a_ref, z_ref, h_dec_ref, b_dec_ref, struct_ref, attr_ref, *, tile_m):
    """Structure + attribute decoders on a row tile.

        struct_tile = z_tile @ z.T                       (contract last dims; no transpose copy)
        attr_tile   = relu(A_tile @ (z @ W_dec) + b_dec) (h_dec = z @ W_dec precomputed/fused)
    """
    row0 = pl.multiple_of(pl.program_id(0) * tile_m, tile_m)
    z_tile = z_ref[pl.ds(row0, tile_m), :]
    struct_ref[...] = lax.dot_general(
        z_tile, z_ref[...],
        dimension_numbers=(((1,), (1,)), ((), ())),
        preferred_element_type=jnp.float32).astype(struct_ref.dtype)

    agg = jnp.dot(a_ref[...], h_dec_ref[...], preferred_element_type=jnp.float32)
    attr_ref[...] = jnp.maximum(agg + b_dec_ref[...], 0.0).astype(attr_ref.dtype)


# ---------------------------------------------------------------------------
# Glue (plain JAX): adjacency normalization + parameter init + forward driver
# ---------------------------------------------------------------------------

def normalized_adjacency(edge_index, num_nodes):
    """Dense D^{-1/2} (A + I) D^{-1/2} as in PyG gcn_norm (message: src -> dst)."""
    src = edge_index[0]
    dst = edge_index[1]
    a = jnp.zeros((num_nodes, num_nodes), jnp.float32)
    a = a.at[dst, src].set(1.0)                                  # A[dst, src] = 1 (deduplicated)
    a = jnp.maximum(a, jnp.eye(num_nodes, dtype=jnp.float32))    # add remaining self loops
    deg = jnp.sum(a, axis=1)
    d_inv_sqrt = jax.lax.rsqrt(deg)                              # deg >= 1 due to self loops
    return a * d_inv_sqrt[:, None] * d_inv_sqrt[None, :]


def glorot(key, f_in, f_out):
    limit = jnp.sqrt(6.0 / (f_in + f_out))
    return jax.random.uniform(key, (f_in, f_out), jnp.float32, -limit, limit)


def init_params(key, n_input, n_hidden, n_layers):
    """Encoder: n_layers GCNConv layers (n_input -> n_hidden -> ... -> n_hidden);
    attribute decoder: 1 GCNConv layer (n_hidden -> n_input)."""
    dims = [n_input] + [n_hidden] * n_layers
    enc_params = []
    for i in range(n_layers):
        key, wk = jax.random.split(key)
        w = glorot(wk, dims[i], dims[i + 1])
        b = jnp.zeros((1, dims[i + 1]), jnp.float32)
        enc_params.append((w, b))
    key, wk = jax.random.split(key)
    dec_w = glorot(wk, n_hidden, n_input)
    dec_b = jnp.zeros((1, n_input), jnp.float32)
    return enc_params, (dec_w, dec_b)


def _bytes(shape, dtype):
    return math.prod(shape) * jnp.dtype(dtype).itemsize


def _compiler_params(block_bytes):
    """Parallel row axis + explicit scoped-VMEM limit sized to the working set.

    2x each block for double-buffered pipelining + fixed headroom; floor at 16 MiB,
    cap at 100 MiB (only reached when the working set itself is large, i.e. v5e/v6e
    territory — on v7x such a config would not fit physical VMEM anyway)."""
    need = 2 * int(block_bytes) + (4 << 20)
    limit = int(min(max(need, 16 << 20), 100 << 20))
    return pltpu.CompilerParams(dimension_semantics=("parallel",),
                                vmem_limit_bytes=limit)


def dominant_forward(x, edge_index, enc_params, dec_params, *, tile_m=256):
    n, f_in = x.shape
    n_layers = len(enc_params)
    dec_w, dec_b = dec_params
    n_hidden = dec_w.shape[0]

    tm = min(tile_m, n)
    assert n % tm == 0, "demo keeps N a multiple of tile_m"
    # TODO(synk): pad / mask a ragged last row tile for N not a multiple of tile_m.
    grid = (n // tm,)

    a_hat = normalized_adjacency(edge_index, n).astype(jnp.bfloat16)
    x_bf = x.astype(jnp.bfloat16)
    enc_w = [w.astype(jnp.bfloat16) for w, _ in enc_params]
    enc_b = [b.astype(jnp.float32).reshape(1, -1) for _, b in enc_params]
    dec_w_bf = dec_w.astype(jnp.bfloat16)
    dec_b_f = dec_b.astype(jnp.float32).reshape(1, -1)

    def tiled(shape):
        return pl.BlockSpec(shape, lambda i: (i, 0))

    def full(shape):
        return pl.BlockSpec(shape, lambda i: (0, 0))

    # ----- stage 0: h0 = x @ W0 (row-tiled; rows independent) -----
    h_w = enc_w[0].shape[1]
    h = pl.pallas_call(
        _feat_kernel,
        out_shape=jax.ShapeDtypeStruct((n, h_w), jnp.bfloat16),
        grid=grid,
        in_specs=[tiled((tm, f_in)), full((f_in, h_w))],
        out_specs=tiled((tm, h_w)),
        compiler_params=_compiler_params(
            _bytes((tm, f_in), jnp.bfloat16) + _bytes((f_in, h_w), jnp.bfloat16)
            + _bytes((tm, h_w), jnp.bfloat16)),
        cost_estimate=pl.CostEstimate(
            flops=2 * n * f_in * h_w, transcendentals=0,
            bytes_accessed=_bytes((n, f_in), jnp.bfloat16)
            + _bytes((f_in, h_w), jnp.bfloat16) + _bytes((n, h_w), jnp.bfloat16)),
    )(x_bf, enc_w[0])

    # ----- propagation stages: z_{l+1} = relu(A_hat @ h_l + b_l), fused h_{l+1} -----
    z = None
    for l in range(n_layers):
        f_cur = enc_w[l].shape[1]
        w_next = enc_w[l + 1] if l + 1 < n_layers else dec_w_bf
        f_next = w_next.shape[1]

        block_bytes = (_bytes((tm, n), jnp.bfloat16)          # A_hat row tile
                       + _bytes((n, f_cur), jnp.bfloat16)     # h (full)
                       + _bytes((1, f_cur), jnp.float32)      # bias
                       + _bytes((f_cur, f_next), jnp.bfloat16)  # W_next
                       + _bytes((tm, f_cur), jnp.bfloat16)    # z out tile
                       + _bytes((tm, f_next), jnp.bfloat16))  # h_next out tile
        z, h = pl.pallas_call(
            _prop_kernel,
            out_shape=(jax.ShapeDtypeStruct((n, f_cur), jnp.bfloat16),
                       jax.ShapeDtypeStruct((n, f_next), jnp.bfloat16)),
            grid=grid,
            in_specs=[tiled((tm, n)),
                      full((n, f_cur)),
                      full((1, f_cur)),
                      full((f_cur, f_next))],
            out_specs=(tiled((tm, f_cur)), tiled((tm, f_next))),
            compiler_params=_compiler_params(block_bytes),
            cost_estimate=pl.CostEstimate(
                flops=2 * n * n * f_cur + 2 * n * f_cur * f_next,
                transcendentals=0,
                bytes_accessed=_bytes((n, n), jnp.bfloat16)
                + 2 * _bytes((n, f_cur), jnp.bfloat16)
                + _bytes((n, f_next), jnp.bfloat16)),
        )(a_hat, h, enc_b[l], w_next)

    # After the loop: z = final encoder embedding, h = h_dec = z @ W_dec.

    # ----- decoders: struct = z @ z.T (bf16 out), attr = relu(A_hat @ h_dec + b_dec) -----
    block_bytes = (_bytes((tm, n), jnp.bfloat16)
                   + _bytes((n, n_hidden), jnp.bfloat16)
                   + _bytes((n, f_in), jnp.bfloat16)
                   + _bytes((1, f_in), jnp.float32)
                   + _bytes((tm, n), jnp.bfloat16)
                   + _bytes((tm, f_in), jnp.float32))
    struct, attr = pl.pallas_call(
        functools.partial(_decoder_kernel, tile_m=tm),
        out_shape=(jax.ShapeDtypeStruct((n, n), jnp.bfloat16),
                   jax.ShapeDtypeStruct((n, f_in), jnp.float32)),
        grid=grid,
        in_specs=[tiled((tm, n)),
                  full((n, n_hidden)),
                  full((n, f_in)),
                  full((1, f_in))],
        out_specs=(tiled((tm, n)), tiled((tm, f_in))),
        compiler_params=_compiler_params(block_bytes),
        cost_estimate=pl.CostEstimate(
            flops=2 * n * n * n_hidden + 2 * n * n * f_in,
            transcendentals=0,
            bytes_accessed=2 * _bytes((n, n), jnp.bfloat16)
            + _bytes((n, n_hidden), jnp.bfloat16)
            + _bytes((n, f_in), jnp.bfloat16) + _bytes((n, f_in), jnp.float32)),
    )(a_hat, z, h, dec_b_f)

    return struct, attr


def reference_forward(x, edge_index, enc_params, dec_params):
    """Pure-JAX reference mirroring the kernel's dtype flow (bf16 MXU inputs, f32 acc)."""
    a = normalized_adjacency(edge_index, x.shape[0]).astype(jnp.bfloat16)
    dec_w, dec_b = dec_params
    enc_w = [w.astype(jnp.bfloat16) for w, _ in enc_params]
    enc_b = [b.astype(jnp.float32).reshape(1, -1) for _, b in enc_params]
    dec_w_bf = dec_w.astype(jnp.bfloat16)

    h = jnp.dot(x.astype(jnp.bfloat16), enc_w[0],
                preferred_element_type=jnp.float32).astype(jnp.bfloat16)
    z = None
    for l in range(len(enc_params)):
        agg = jnp.dot(a, h, preferred_element_type=jnp.float32)
        z = jnp.maximum(agg + enc_b[l], 0.0).astype(jnp.bfloat16)
        w_next = enc_w[l + 1] if l + 1 < len(enc_params) else dec_w_bf
        h = jnp.dot(z, w_next, preferred_element_type=jnp.float32).astype(jnp.bfloat16)
    struct = lax.dot_general(z, z, (((1,), (1,)), ((), ())),
                             preferred_element_type=jnp.float32).astype(jnp.bfloat16)
    attr = jnp.maximum(jnp.dot(a, h, preferred_element_type=jnp.float32)
                       + dec_b.astype(jnp.float32).reshape(1, -1), 0.0)
    return struct, attr


# ---------------------------------------------------------------------------
# Main
# ---------------------------------------------------------------------------

if __name__ == "__main__":
    # 256-wide feature dims fill the v6e/v7x 256x256 MXUs; N=512 with TM=256 exercises
    # the parallel row-tiled grid while staying small enough for a quick demo run.
    # (Tune / benchmark at N >= 2k where A_hat and struct dominate HBM traffic.)
    N_NODES = 512
    N_INPUT = 256
    N_HIDDEN = 256
    N_LAYERS = 2
    N_EDGES = 2048

    key = jax.random.PRNGKey(0)
    kx, ke, kp = jax.random.split(key, 3)

    # Node features [N, F_in]
    x = jax.random.normal(kx, (N_NODES, N_INPUT), jnp.float32)

    # Deterministic random edge_index [2, E] (src row, dst row) like PyG
    edge_index = jax.random.randint(ke, (2, N_EDGES), 0, N_NODES, dtype=jnp.int32)

    enc_params, dec_params = init_params(kp, N_INPUT, N_HIDDEN, N_LAYERS)

    struct_recon, attr_recon = dominant_forward(x, edge_index, enc_params, dec_params)
    jax.block_until_ready((struct_recon, attr_recon))

    assert struct_recon.shape == (N_NODES, N_NODES)
    assert attr_recon.shape == (N_NODES, N_INPUT)
    assert bool(jnp.all(jnp.isfinite(struct_recon.astype(jnp.float32))))
    assert bool(jnp.all(jnp.isfinite(attr_recon)))

    struct_ref, attr_ref = reference_forward(x, edge_index, enc_params, dec_params)
    assert jnp.allclose(struct_recon.astype(jnp.float32), struct_ref.astype(jnp.float32),
                        rtol=3e-2, atol=3e-1)
    assert jnp.allclose(attr_recon, attr_ref, rtol=3e-2, atol=1e-1)

    print("KERNEL_OK")
</pallas_src>

<mosaic_0001>
module attributes {stable_mosaic.version = 11 : i64} {
  func.func @_feat_kernel(%arg0: i32, %arg1: memref<256x256xbf16, #tpu.memory_space<vmem>>, %arg2: memref<256x256xbf16, #tpu.memory_space<vmem>>, %arg3: memref<256x256xbf16, #tpu.memory_space<vmem>>) attributes {dimension_semantics = [#tpu.dimension_semantics<parallel>], iteration_bounds = array<i64: 2>, scalar_prefetch = 0 : i64, scratch_operands = 0 : i64, tpu.core_type = #tpu.core_type<tc>, window_params = [{transform_indices = @transform_0, window_bounds = array<i64: 256, 256>}, {pipeline_mode = #tpu.pipeline_mode<synchronous>, transform_indices = @transform_1, window_bounds = array<i64: 256, 256>}, {transform_indices = @transform_2, window_bounds = array<i64: 256, 256>}]} {
    %c0 = arith.constant 0 : index
    %c0_0 = arith.constant 0 : index
    %0 = vector.load %arg1[%c0, %c0_0] : memref<256x256xbf16, #tpu.memory_space<vmem>>, vector<256x256xbf16>
    %c0_1 = arith.constant 0 : index
    %c0_2 = arith.constant 0 : index
    %1 = vector.load %arg2[%c0_1, %c0_2] : memref<256x256xbf16, #tpu.memory_space<vmem>>, vector<256x256xbf16>
    %cst = arith.constant dense<0.000000e+00> : vector<256x256xf32>
    %2 = tpu.matmul %0, %1, %cst {dimension_numbers = #tpu.dot_dimension_numbers<[1], [0], [0], [1], [0, 0, 1, 1], [], []>} : vector<256x256xbf16>, vector<256x256xbf16>, vector<256x256xf32> -> vector<256x256xf32>
    %3 = arith.truncf %2 : vector<256x256xf32> to vector<256x256xbf16>
    %c0_3 = arith.constant 0 : index
    %c0_4 = arith.constant 0 : index
    %4 = vector.load %arg3[%c0_3, %c0_4] : memref<256x256xbf16, #tpu.memory_space<vmem>>, vector<256x256xbf16>
    tpu.vector_store %arg3[%c0_3, %c0_4], %3 {strides = array<i32>} : memref<256x256xbf16, #tpu.memory_space<vmem>>, vector<256x256xbf16>,
    return
  }
  func.func @transform_0(%arg0: i32) -> (i32, i32) {
    %c0_i32 = arith.constant 0 : i32
    %c0_i32_0 = arith.constant 0 : i32
    return %arg0, %c0_i32 : i32, i32
  }
  func.func @transform_1(%arg0: i32) -> (i32, i32) {
    %c0_i32 = arith.constant 0 : i32
    %c0_i32_0 = arith.constant 0 : i32
    %c0_i32_1 = arith.constant 0 : i32
    return %c0_i32, %c0_i32_0 : i32, i32
  }
  func.func @transform_2(%arg0: i32) -> (i32, i32) {
    %c0_i32 = arith.constant 0 : i32
    %c0_i32_0 = arith.constant 0 : i32
    return %arg0, %c0_i32 : i32, i32
  }
}

</mosaic_0001>

<llo_original>
// kernel: tpu_custom_call.1
$region0: #{tpu_custom_call.1}
  #allocation0 [shape = 'u32[]', space=smem, size = 0x4, offset = 0x4, fixed_abs, tag = 'smem constant byte address 0x4 - core index']
  #allocation1 [shape = 'u32[144,128]{1,0:T(1,128)}', space=vmem, size = 0x12000, scoped, tag = 'internal scratch']
  %s0 = inlined_call_operand.hbm [shape: bf16[512,256], index: 0, kind: input, shape index: {}]
  %s1 = inlined_call_operand.hbm [shape: bf16[256,256], index: 1, kind: input, shape index: {}]
  %s2 = inlined_call_operand.hbm [shape: bf16[512,256], index: 2, kind: output, shape index: {}]
  %s3 = sld [smem:[#allocation0]]
  $region49: #{tpu_custom_call.1} parent=0
    _
  %s5 = ssub.s32 1, %s3
  %s6 = scalar_select 0, %s5, %s3
  $region1: #{tpu_custom_call.1} parent=0
    #allocation2 [shape = 'u8[262144]{0}', space=vmem, size = 0x40000, scoped, tag = 'input window, operand 0']
    #allocation3 [shape = 's32[2]{0}', space=sflag, size = 0x8, scoped, tag = 'scoped memory for tpu_custom_call.1']
    #allocation4 [shape = 's32[2]{0}', space=sflag, size = 0x8, scoped, tag = 'scoped memory for tpu_custom_call.1']
    #allocation5 [shape = 'u8[131072]{0}', space=vmem, size = 0x20000, scoped, tag = 'input window, operand 1, single buffered']
    #allocation6 [shape = 's32[1]{0}', space=sflag, size = 0x4, scoped, tag = 'scoped memory for tpu_custom_call.1']
    #allocation7 [shape = 'u8[262144]{0}', space=vmem, size = 0x40000, scoped, tag = 'output window, operand 0']
    %7 = vsyncpa [#allocation3], 0
    %s8 = scalar_lea.sflag [#allocation3], 1
    %9 = vsyncpa %s8, 0
    %10 = vsyncpa [#allocation6], 0
    %11 = vsyncpa [#allocation4], 0
    %s12 = scalar_lea.sflag [#allocation4], 1
    %13 = vsyncpa %s12, 0
    loop: start=0, step=1, limit=4
    $region2: #{tpu_custom_call.1} parent=1 // loop_pre_header
      _
    $region3: #{tpu_custom_call.1} parent=1 // loop_header
      %s15 = sphi 0, %s19
      %p16 = scmp.ge.s32.totalorder %s15, 4
      %s25 = sphi 0, %s27
      %s28 = sphi 0, %s25
      %s29 = sphi 0, %s28
      %s45 = sphi 0, %s29
      %s49 = sphi 0, %s49
      %s51 = sphi 0, %s49
      %s52 = sphi 0, %s51
      %s66 = sphi 0, %s52
      %s72 = sphi 0, %s74
      %s75 = sphi 0, %s72
      %s76 = sphi 0, %s75
      %s92 = sphi 0, %s76
    $region4: #{tpu_custom_call.1} parent=1 // loop_header_branch
      %18 = sbr.rel (%p16) target = $region8
    $region5: #{tpu_custom_call.1} parent=1 // loop_body
      %s20 = ssub.s32 %s15, 1
      %s21 = ssub.s32 %s15, 2
      %s22 = sadd.s32 %s15, 1
      %s23 = ssub.s32 %s15, %s22
      %p24 = scmp.eq.s32.totalorder %s23, 0
      %s26 = sadd.s32 %s25, 1
      %s27 = scalar_select %p24, %s25, %s26
      %p30 = pneg %p24
      %p31 = scmp.eq.s32.totalorder %s15, 1
      %p32 = por %p30, %p31
      %p33 = scmp.ne.s32.totalorder %s25, %s28
      %p34 = scmp.eq.s32.totalorder %s15, 0
      %p35 = por %p33, %p34
      %p36 = scmp.ne.s32.totalorder %s25, %s28
      %p37 = scmp.eq.s32.totalorder %s20, 1
      %p38 = por %p36, %p37
      %p39 = scmp.ne.s32.totalorder %s28, %s29
      %p40 = scmp.eq.s32.totalorder %s20, 0
      %p41 = por %p39, %p40
      %p42 = scmp.ne.s32.totalorder %s28, %s29
      %p43 = scmp.eq.s32.totalorder %s21, 1
      %p44 = por %p42, %p43
      %p46 = scmp.ne.s32.totalorder %s29, %s45
      %p47 = scmp.eq.s32.totalorder %s21, 0
      %p48 = por %p46, %p47
      %s50 = sadd.s32 %s49, 1
      %p53 = scmp.eq.s32.totalorder %s15, 1
      %p54 = scmp.ne.s32.totalorder %s49, %s51
      %p55 = scmp.eq.s32.totalorder %s15, 0
      %p56 = por %p54, %p55
      %p57 = scmp.ne.s32.totalorder %s49, %s51
      %p58 = scmp.eq.s32.totalorder %s20, 1
      %p59 = por %p57, %p58
      %p60 = scmp.ne.s32.totalorder %s51, %s52
      %p61 = scmp.eq.s32.totalorder %s20, 0
      %p62 = por %p60, %p61
      %p63 = scmp.ne.s32.totalorder %s51, %s52
      %p64 = scmp.eq.s32.totalorder %s21, 1
      %p65 = por %p63, %p64
      %p67 = scmp.ne.s32.totalorder %s52, %s66
      %p68 = scmp.eq.s32.totalorder %s21, 0
      %p69 = por %p67, %p68
      %s70 = ssub.s32 %s15, %s22
      %p71 = scmp.eq.s32.totalorder %s70, 0
      %s73 = sadd.s32 %s72, 1
      %s74 = scalar_select %p71, %s72, %s73
      %p77 = pneg %p71
      %p78 = scmp.eq.s32.totalorder %s15, 1
      %p79 = por %p77, %p78
      %p80 = scmp.ne.s32.totalorder %s72, %s75
      %p81 = scmp.eq.s32.totalorder %s15, 0
      %p82 = por %p80, %p81
      %p83 = scmp.ne.s32.totalorder %s72, %s75
      %p84 = scmp.eq.s32.totalorder %s20, 1
      %p85 = por %p83, %p84
      %p86 = scmp.ne.s32.totalorder %s75, %s76
      %p87 = scmp.eq.s32.totalorder %s20, 0
      %p88 = por %p86, %p87
      %p89 = scmp.ne.s32.totalorder %s75, %s76
      %p90 = scmp.eq.s32.totalorder %s21, 1
      %p91 = por %p89, %p90
      %p93 = scmp.ne.s32.totalorder %s76, %s92
      %p94 = scmp.eq.s32.totalorder %s21, 0
      %p95 = por %p93, %p94
      %p96 = scmp.le.s32.totalorder 1, %s15
      %p97 = scmp.lt.s32.totalorder %s15, 3
      %p98 = pnand %p96, %p97
      %p99 = pneg %p98
      // Predicated region
      $region9: #{tpu_custom_call.1} parent=5 // pred_check
        _
      $region10: #{tpu_custom_call.1} parent=5 // pred_check_branch
        %101 = sbr.rel (%p98) target = $region12
      $region11: #{tpu_custom_call.1} parent=5 // pred_region
        %s102 = ssub.s32 %s15, 1
        // Predicated region
        $region13: #{tpu_custom_call.1} parent=11 // pred_check
          %p103 = pneg %p62
        $region14: #{tpu_custom_call.1} parent=11 // pred_check_branch
          %105 = sbr.rel (%p103) target = $region16
        $region15: #{tpu_custom_call.1} parent=11 // pred_region
          %s107 = ssub.s32 4096, 4096
          %108 = vsyncadd [#allocation6], %s107
          %s109 = sshll.u32 [#allocation5], 4
          %s110 = int_to_ptr.vmem [resolvable:$true] %s109
          %115 = dma.hbm_to_vmem [thread:$0]  %s1, 4096, %s110, [#allocation6], 128, 128, 8
        $region16: #{tpu_custom_call.1} parent=11 // pred_fallthru
          _
      $region12: #{tpu_custom_call.1} parent=5 // pred_fallthru
        _
      %p116 = scmp.lt.s32.totalorder %s15, 2
      // Predicated region
      $region17: #{tpu_custom_call.1} parent=5 // pred_check
        %p117 = pneg %p116
      $region18: #{tpu_custom_call.1} parent=5 // pred_check_branch
        %119 = sbr.rel (%p117) target = $region20
      $region19: #{tpu_custom_call.1} parent=5 // pred_region
        // Predicated region
        $region21: #{tpu_custom_call.1} parent=19 // pred_check
          %p120 = pneg %p35
        $region22: #{tpu_custom_call.1} parent=19 // pred_check_branch
          %122 = sbr.rel (%p120) target = $region24
        $region23: #{tpu_custom_call.1} parent=19 // pred_region
          %s123 = sand.u32 %s25, 1
          %s124 = scalar_lea.sflag [#allocation3], %s123
          %s125 = sand.u32 %s25, 1
          %s126 = smul.addr %s125, 256
          %s127 = scalar_lea.vmem [#allocation2], %s126
          %s128 = smul.u32 32, %s15
          %s130 = ssub.s32 4096, 4096
          %131 = vsyncadd %s124, %s130
          %s132 = smul.addr %s128, 2
          %s133 = smul.addr %s132, 64
          %s134 = scalar_lea.hbm %s0, %s133
          %s135 = sshll.u32 %s127, 4
          %s136 = int_to_ptr.vmem [resolvable:$true] %s135
          %141 = dma.hbm_to_vmem [thread:$0]  %s134, 4096, %s136, %s124, 128, 128, 8
        $region24: #{tpu_custom_call.1} parent=19 // pred_fallthru
          _
      $region20: #{tpu_custom_call.1} parent=5 // pred_fallthru
        _
      %p142 = scmp.le.s32.totalorder 1, %s15
      %p143 = scmp.lt.s32.totalorder %s15, 3
      %p144 = pnand %p142, %p143
      %p145 = pneg %p144
      // Predicated region
      $region25: #{tpu_custom_call.1} parent=5 // pred_check
        _
      $region26: #{tpu_custom_call.1} parent=5 // pred_check_branch
        %147 = sbr.rel (%p144) target = $region28
      $region27: #{tpu_custom_call.1} parent=5 // pred_region
        %s148 = ssub.s32 %s15, 1
        %s149 = sand.u32 %s28, 1
        %s150 = scalar_lea.sflag [#allocation3], %s149
        %s151 = sand.u32 %s28, 1
        %s152 = smul.addr %s151, 256
        %s153 = scalar_lea.vmem [#allocation2], %s152
        // Predicated region
        $region29: #{tpu_custom_call.1} parent=27 // pred_check
          %p154 = pneg %p41
        $region30: #{tpu_custom_call.1} parent=27 // pred_check_branch
          %156 = sbr.rel (%p154) target = $region32
        $region31: #{tpu_custom_call.1} parent=27 // pred_region
          %157 = dma.done %s150, 4096
        $region32: #{tpu_custom_call.1} parent=27 // pred_fallthru
          _
        // Predicated region
        $region33: #{tpu_custom_call.1} parent=27 // pred_check
          %p158 = pneg %p62
        $region34: #{tpu_custom_call.1} parent=27 // pred_check_branch
          %160 = sbr.rel (%p158) target = $region36
        $region35: #{tpu_custom_call.1} parent=27 // pred_region
          %161 = dma.done [#allocation6], 4096
        $region36: #{tpu_custom_call.1} parent=27 // pred_fallthru
          _
        %s162 = sand.u32 %s28, 1
        %s163 = scalar_lea.sflag [#allocation3], %s162
        %s164 = sand.u32 %s28, 1
        %s165 = smul.addr %s164, 256
        %s166 = scalar_lea.vmem [#allocation2], %s165
        %p167 = pneg %p41
        %p168 = pneg %p38
        %p169 = pneg %p62
        %p170 = pneg %p59
        %p171 = pneg %p88
        %p172 = pneg %p85
        %s173 = sand.u32 %s75, 1
        %s174 = scalar_lea.sflag [#allocation4], %s173
        %s175 = sand.u32 %s75, 1
        %s176 = smul.addr %s175, 256
        %s177 = scalar_lea.vmem [#allocation7], %s176
        %s178 = smul.u32 32, %s20
        %s179 = smul.u32 32, %s20
        %v180 = vld [vmem:[%s153] sm:$0xff]
        %v181 = vld [vmem:[%s153 + $0x8] sm:$0xff]
        %v182 = vld [vmem:[%s153 + $0x10] sm:$0xff]
        %v183 = vld [vmem:[%s153 + $0x18] sm:$0xff]
        %v184 = vld [vmem:[%s153 + $0x20] sm:$0xff]
        %v185 = vld [vmem:[%s153 + $0x28] sm:$0xff]
        %v186 = vld [vmem:[%s153 + $0x30] sm:$0xff]
        %v187 = vld [vmem:[%s153 + $0x38] sm:$0xff]
        %v188 = vld [vmem:[%s153 + $0x40] sm:$0xff]
        %v189 = vld [vmem:[%s153 + $0x48] sm:$0xff]
        %v190 = vld [vmem:[%s153 + $0x50] sm:$0xff]
        %v191 = vld [vmem:[%s153 + $0x58] sm:$0xff]
        %v192 = vld [vmem:[%s153 + $0x60] sm:$0xff]
        %v193 = vld [vmem:[%s153 + $0x68] sm:$0xff]
        %v194 = vld [vmem:[%s153 + $0x70] sm:$0xff]
        %v195 = vld [vmem:[%s153 + $0x78] sm:$0xff]
        %v196 = vld [vmem:[%s153 + $0x80] sm:$0xff]
        %v197 = vld [vmem:[%s153 + $0x88] sm:$0xff]
        %v198 = vld [vmem:[%s153 + $0x90] sm:$0xff]
        %v199 = vld [vmem:[%s153 + $0x98] sm:$0xff]
        %v200 = vld [vmem:[%s153 + $0xa0] sm:$0xff]
        %v201 = vld [vmem:[%s153 + $0xa8] sm:$0xff]
        %v202 = vld [vmem:[%s153 + $0xb0] sm:$0xff]
        %v203 = vld [vmem:[%s153 + $0xb8] sm:$0xff]
        %v204 = vld [vmem:[%s153 + $0xc0] sm:$0xff]
        %v205 = vld [vmem:[%s153 + $0xc8] sm:$0xff]
        %v206 = vld [vmem:[%s153 + $0xd0] sm:$0xff]
        %v207 = vld [vmem:[%s153 + $0xd8] sm:$0xff]
        %v208 = vld [vmem:[%s153 + $0xe0] sm:$0xff]
        %v209 = vld [vmem:[%s153 + $0xe8] sm:$0xff]
        %v210 = vld [vmem:[%s153 + $0xf0] sm:$0xff]
        %v211 = vld [vmem:[%s153 + $0xf8] sm:$0xff]
        %v212 = vld [vmem:[#allocation5] sm:$0xff]
        %v213 = vld [vmem:[#allocation5 + $0x8] sm:$0xff]
        %v214 = vld [vmem:[#allocation5 + $0x10] sm:$0xff]
        %v215 = vld [vmem:[#allocation5 + $0x18] sm:$0xff]
        %v216 = vld [vmem:[#allocation5 + $0x20] sm:$0xff]
        %v217 = vld [vmem:[#allocation5 + $0x28] sm:$0xff]
        %v218 = vld [vmem:[#allocation5 + $0x30] sm:$0xff]
        %v219 = vld [vmem:[#allocation5 + $0x38] sm:$0xff]
        %v220 = vld [vmem:[#allocation5 + $0x40] sm:$0xff]
        %v221 = vld [vmem:[#allocation5 + $0x48] sm:$0xff]
        %v222 = vld [vmem:[#allocation5 + $0x50] sm:$0xff]
        %v223 = vld [vmem:[#allocation5 + $0x58] sm:$0xff]
        %v224 = vld [vmem:[#allocation5 + $0x60] sm:$0xff]
        %v225 = vld [vmem:[#allocation5 + $0x68] sm:$0xff]
        %v226 = vld [vmem:[#allocation5 + $0x70] sm:$0xff]
        %v227 = vld [vmem:[#allocation5 + $0x78] sm:$0xff]
        %v228 = vld [vmem:[#allocation5 + $0x80] sm:$0xff]
        %v229 = vld [vmem:[#allocation5 + $0x88] sm:$0xff]
        %v230 = vld [vmem:[#allocation5 + $0x90] sm:$0xff]
        %v231 = vld [vmem:[#allocation5 + $0x98] sm:$0xff]
        %v232 = vld [vmem:[#allocation5 + $0xa0] sm:$0xff]
        %v233 = vld [vmem:[#allocation5 + $0xa8] sm:$0xff]
        %v234 = vld [vmem:[#allocation5 + $0xb0] sm:$0xff]
        %v235 = vld [vmem:[#allocation5 + $0xb8] sm:$0xff]
        %v236 = vld [vmem:[#allocation5 + $0xc0] sm:$0xff]
        %v237 = vld [vmem:[#allocation5 + $0xc8] sm:$0xff]
        %v238 = vld [vmem:[#allocation5 + $0xd0] sm:$0xff]
        %v239 = vld [vmem:[#allocation5 + $0xd8] sm:$0xff]
        %v240 = vld [vmem:[#allocation5 + $0xe0] sm:$0xff]
        %v241 = vld [vmem:[#allocation5 + $0xe8] sm:$0xff]
        %v242 = vld [vmem:[#allocation5 + $0xf0] sm:$0xff]
        %v243 = vld [vmem:[#allocation5 + $0xf8] sm:$0xff]
        %v276 = vunpack.c.l.b16 %v180
        %v277 = vunpack.c.h.b16 %v180
        %v278 = vunpack.c.l.b16 %v181
        %v279 = vunpack.c.h.b16 %v181
        %v280 = vunpack.c.l.b16 %v182
        %v281 = vunpack.c.h.b16 %v182
        %v282 = vunpack.c.l.b16 %v183
        %v283 = vunpack.c.h.b16 %v183
        %v284 = vunpack.c.l.b16 %v184
        %v285 = vunpack.c.h.b16 %v184
        %v286 = vunpack.c.l.b16 %v185
        %v287 = vunpack.c.h.b16 %v185
        %v288 = vunpack.c.l.b16 %v186
        %v289 = vunpack.c.h.b16 %v186
        %v290 = vunpack.c.l.b16 %v187
        %v291 = vunpack.c.h.b16 %v187
        %v292 = vunpack.c.l.b16 %v188
        %v293 = vunpack.c.h.b16 %v188
        %v294 = vunpack.c.l.b16 %v189
        %v295 = vunpack.c.h.b16 %v189
        %v296 = vunpack.c.l.b16 %v190
        %v297 = vunpack.c.h.b16 %v190
        %v298 = vunpack.c.l.b16 %v191
        %v299 = vunpack.c.h.b16 %v191
        %v300 = vunpack.c.l.b16 %v192
        %v301 = vunpack.c.h.b16 %v192
        %v302 = vunpack.c.l.b16 %v193
        %v303 = vunpack.c.h.b16 %v193
        %v304 = vunpack.c.l.b16 %v194
        %v305 = vunpack.c.h.b16 %v194
        %v306 = vunpack.c.l.b16 %v195
        %v307 = vunpack.c.h.b16 %v195
        %v308 = vunpack.c.l.b16 %v196
        %v309 = vunpack.c.h.b16 %v196
        %v310 = vunpack.c.l.b16 %v197
        %v311 = vunpack.c.h.b16 %v197
        %v312 = vunpack.c.l.b16 %v198
        %v313 = vunpack.c.h.b16 %v198
        %v314 = vunpack.c.l.b16 %v199
        %v315 = vunpack.c.h.b16 %v199
        %v316 = vunpack.c.l.b16 %v200
        %v317 = vunpack.c.h.b16 %v200
        %v318 = vunpack.c.l.b16 %v201
        %v319 = vunpack.c.h.b16 %v201
        %v320 = vunpack.c.l.b16 %v202
        %v321 = vunpack.c.h.b16 %v202
        %v322 = vunpack.c.l.b16 %v203
        %v323 = vunpack.c.h.b16 %v203
        %v324 = vunpack.c.l.b16 %v204
        %v325 = vunpack.c.h.b16 %v204
        %v326 = vunpack.c.l.b16 %v205
        %v327 = vunpack.c.h.b16 %v205
        %v328 = vunpack.c.l.b16 %v206
        %v329 = vunpack.c.h.b16 %v206
        %v330 = vunpack.c.l.b16 %v207
        %v331 = vunpack.c.h.b16 %v207
        %v332 = vunpack.c.l.b16 %v208
        %v333 = vunpack.c.h.b16 %v208
        %v334 = vunpack.c.l.b16 %v209
        %v335 = vunpack.c.h.b16 %v209
        %v336 = vunpack.c.l.b16 %v210
        %v337 = vunpack.c.h.b16 %v210
        %v338 = vunpack.c.l.b16 %v211
        %v339 = vunpack.c.h.b16 %v211
        %v340 = vpack.c.b16 %v278, %v276
        %v341 = vpack.c.b16 %v279, %v277
        %v342 = vpack.c.b16 %v282, %v280
        %v343 = vpack.c.b16 %v283, %v281
        %v344 = vpack.c.b16 %v286, %v284
        %v345 = vpack.c.b16 %v287, %v285
        %v346 = vpack.c.b16 %v290, %v288
        %v347 = vpack.c.b16 %v291, %v289
        %v348 = vpack.c.b16 %v294, %v292
        %v349 = vpack.c.b16 %v295, %v293
        %v350 = vpack.c.b16 %v298, %v296
        %v351 = vpack.c.b16 %v299, %v297
        %v352 = vpack.c.b16 %v302, %v300
        %v353 = vpack.c.b16 %v303, %v301
        %v354 = vpack.c.b16 %v306, %v304
        %v355 = vpack.c.b16 %v307, %v305
        %v356 = vpack.c.b16 %v310, %v308
        %v357 = vpack.c.b16 %v311, %v309
        %v358 = vpack.c.b16 %v314, %v312
        %v359 = vpack.c.b16 %v315, %v313
        %v360 = vpack.c.b16 %v318, %v316
        %v361 = vpack.c.b16 %v319, %v317
        %v362 = vpack.c.b16 %v322, %v320
        %v363 = vpack.c.b16 %v323, %v321
        %v364 = vpack.c.b16 %v326, %v324
        %v365 = vpack.c.b16 %v327, %v325
        %v366 = vpack.c.b16 %v330, %v328
        %v367 = vpack.c.b16 %v331, %v329
        %v368 = vpack.c.b16 %v334, %v332
        %v369 = vpack.c.b16 %v335, %v333
        %v370 = vpack.c.b16 %v338, %v336
        %v371 = vpack.c.b16 %v339, %v337
        %v436 = vunpack.c.l.b16 %v212
        %v437 = vunpack.c.h.b16 %v212
        %v438 = vunpack.c.l.b16 %v213
        %v439 = vunpack.c.h.b16 %v213
        %v440 = vunpack.c.l.b16 %v214
        %v441 = vunpack.c.h.b16 %v214
        %v442 = vunpack.c.l.b16 %v215
        %v443 = vunpack.c.h.b16 %v215
        %v444 = vunpack.c.l.b16 %v216
        %v445 = vunpack.c.h.b16 %v216
        %v446 = vunpack.c.l.b16 %v217
        %v447 = vunpack.c.h.b16 %v217
        %v448 = vunpack.c.l.b16 %v218
        %v449 = vunpack.c.h.b16 %v218
        %v450 = vunpack.c.l.b16 %v219
        %v451 = vunpack.c.h.b16 %v219
        %v452 = vunpack.c.l.b16 %v220
        %v453 = vunpack.c.h.b16 %v220
        %v454 = vunpack.c.l.b16 %v221
        %v455 = vunpack.c.h.b16 %v221
        %v456 = vunpack.c.l.b16 %v222
        %v457 = vunpack.c.h.b16 %v222
        %v458 = vunpack.c.l.b16 %v223
        %v459 = vunpack.c.h.b16 %v223
        %v460 = vunpack.c.l.b16 %v224
        %v461 = vunpack.c.h.b16 %v224
        %v462 = vunpack.c.l.b16 %v225
        %v463 = vunpack.c.h.b16 %v225
        %v464 = vunpack.c.l.b16 %v226
        %v465 = vunpack.c.h.b16 %v226
        %v466 = vunpack.c.l.b16 %v227
        %v467 = vunpack.c.h.b16 %v227
        %v468 = vunpack.c.l.b16 %v228
        %v469 = vunpack.c.h.b16 %v228
        %v470 = vunpack.c.l.b16 %v229
        %v471 = vunpack.c.h.b16 %v229
        %v472 = vunpack.c.l.b16 %v230
        %v473 = vunpack.c.h.b16 %v230
        %v474 = vunpack.c.l.b16 %v231
        %v475 = vunpack.c.h.b16 %v231
        %v476 = vunpack.c.l.b16 %v232
        %v477 = vunpack.c.h.b16 %v232
        %v478 = vunpack.c.l.b16 %v233
        %v479 = vunpack.c.h.b16 %v233
        %v480 = vunpack.c.l.b16 %v234
        %v481 = vunpack.c.h.b16 %v234
        %v482 = vunpack.c.l.b16 %v235
        %v483 = vunpack.c.h.b16 %v235
        %v484 = vunpack.c.l.b16 %v236
        %v485 = vunpack.c.h.b16 %v236
        %v486 = vunpack.c.l.b16 %v237
        %v487 = vunpack.c.h.b16 %v237
        %v488 = vunpack.c.l.b16 %v238
        %v489 = vunpack.c.h.b16 %v238
        %v490 = vunpack.c.l.b16 %v239
        %v491 = vunpack.c.h.b16 %v239
        %v492 = vunpack.c.l.b16 %v240
        %v493 = vunpack.c.h.b16 %v240
        %v494 = vunpack.c.l.b16 %v241
        %v495 = vunpack.c.h.b16 %v241
        %v496 = vunpack.c.l.b16 %v242
        %v497 = vunpack.c.h.b16 %v242
        %v498 = vunpack.c.l.b16 %v243
        %v499 = vunpack.c.h.b16 %v243
        %v500 = vpack.c.b16 %v438, %v436
        %v501 = vpack.c.b16 %v439, %v437
        %v502 = vpack.c.b16 %v442, %v440
        %v503 = vpack.c.b16 %v443, %v441
        %v504 = vpack.c.b16 %v446, %v444
        %v505 = vpack.c.b16 %v447, %v445
        %v506 = vpack.c.b16 %v450, %v448
        %v507 = vpack.c.b16 %v451, %v449
        %v508 = vpack.c.b16 %v454, %v452
        %v509 = vpack.c.b16 %v455, %v453
        %v510 = vpack.c.b16 %v458, %v456
        %v511 = vpack.c.b16 %v459, %v457
        %v512 = vpack.c.b16 %v462, %v460
        %v513 = vpack.c.b16 %v463, %v461
        %v514 = vpack.c.b16 %v466, %v464
        %v515 = vpack.c.b16 %v467, %v465
        %v516 = vpack.c.b16 %v470, %v468
        %v517 = vpack.c.b16 %v471, %v469
        %v518 = vpack.c.b16 %v474, %v472
        %v519 = vpack.c.b16 %v475, %v473
        %v520 = vpack.c.b16 %v478, %v476
        %v521 = vpack.c.b16 %v479, %v477
        %v522 = vpack.c.b16 %v482, %v480
        %v523 = vpack.c.b16 %v483, %v481
        %v524 = vpack.c.b16 %v486, %v484
        %v525 = vpack.c.b16 %v487, %v485
        %v526 = vpack.c.b16 %v490, %v488
        %v527 = vpack.c.b16 %v491, %v489
        %v528 = vpack.c.b16 %v494, %v492
        %v529 = vpack.c.b16 %v495, %v493
        %v530 = vpack.c.b16 %v498, %v496
        %v531 = vpack.c.b16 %v499, %v497
        %564 = vmatprep.subr.bf16.mxu0 %v501
        %565 = vmatpush1.bf16.msra.mxu0 %v500
        %566 = vmatprep.subr.bf16.mxu0 %v503
        %567 = vmatpush1.bf16.msra.mxu0 %v502
        %568 = vmatprep.subr.bf16.mxu0 %v505
        %569 = vmatpush1.bf16.msra.mxu0 %v504
        %570 = vmatprep.subr.bf16.mxu0 %v507
        %571 = vmatpush1.bf16.msra.mxu0 %v506
        %572 = vmatprep.subr.bf16.mxu0 %v509
        %573 = vmatpush1.bf16.msra.mxu0 %v508
        %574 = vmatprep.subr.bf16.mxu0 %v511
        %575 = vmatpush1.bf16.msra.mxu0 %v510
        %576 = vmatprep.subr.bf16.mxu0 %v513
        %577 = vmatpush1.bf16.msra.mxu0 %v512
        %578 = vmatprep.subr.bf16.mxu0 %v515
        %579 = vmatpush1.bf16.msra.mxu0 %v514
        %580 = vmatprep.subr.bf16.mxu0 %v517
        %581 = vmatpush1.bf16.msra.mxu0 %v516
        %582 = vmatprep.subr.bf16.mxu0 %v519
        %583 = vmatpush1.bf16.msra.mxu0 %v518
        %584 = vmatprep.subr.bf16.mxu0 %v521
        %585 = vmatpush1.bf16.msra.mxu0 %v520
        %586 = vmatprep.subr.bf16.mxu0 %v523
        %587 = vmatpush1.bf16.msra.mxu0 %v522
        %588 = vmatprep.subr.bf16.mxu0 %v525
        %589 = vmatpush1.bf16.msra.mxu0 %v524
        %590 = vmatprep.subr.bf16.mxu0 %v527
        %591 = vmatpush1.bf16.msra.mxu0 %v526
        %592 = vmatprep.subr.bf16.mxu0 %v529
        %593 = vmatpush1.bf16.msra.mxu0 %v528
        %594 = vmatprep.subr.bf16.mxu0 %v531
        %595 = vmatpush1.bf16.msra.mxu0 %v530
        %596 = vmatprep.mubr.bf16.mxu0 %v341
        %597 = vmatmul.mubr.bf16.gmra.mrb[0].mxu0 %v340
        %v598 = vpop.f32.mrb[0].mxu0
        %v599 = vadd.f32 0.0, %v598
        %v600 = vpop.f32.mrb[0].mxu0
        %v601 = vadd.f32 0.0, %v600
        %v602 = vpop.f32.mrb[0].mxu0
        %v603 = vadd.f32 0.0, %v602
        %v604 = vpop.f32.mrb[0].mxu0
        %v605 = vadd.f32 0.0, %v604
        %606 = vmatprep.mubr.bf16.mxu0 %v343
        %607 = vmatmul.mubr.bf16.gmra.mrb[0].mxu0 %v342
        %v608 = vpop.f32.mrb[0].mxu0
        %v609 = vadd.f32 0.0, %v608
        %v610 = vpop.f32.mrb[0].mxu0
        %v611 = vadd.f32 0.0, %v610
        %v612 = vpop.f32.mrb[0].mxu0
        %v613 = vadd.f32 0.0, %v612
        %v614 = vpop.f32.mrb[0].mxu0
        %v615 = vadd.f32 0.0, %v614
        %616 = vmatprep.mubr.bf16.mxu0 %v345
        %617 = vmatmul.mubr.bf16.gmra.mrb[0].mxu0 %v344
        %v618 = vpop.f32.mrb[0].mxu0
        %v619 = vadd.f32 0.0, %v618
        %v620 = vpop.f32.mrb[0].mxu0
        %v621 = vadd.f32 0.0, %v620
        %v622 = vpop.f32.mrb[0].mxu0
        %v623 = vadd.f32 0.0, %v622
        %v624 = vpop.f32.mrb[0].mxu0
        %v625 = vadd.f32 0.0, %v624
        %626 = vmatprep.mubr.bf16.mxu0 %v347
        %627 = vmatmul.mubr.bf16.gmra.mrb[0].mxu0 %v346
        %v628 = vpop.f32.mrb[0].mxu0
        %v629 = vadd.f32 0.0, %v628
        %v630 = vpop.f32.mrb[0].mxu0
        %v631 = vadd.f32 0.0, %v630
        %v632 = vpop.f32.mrb[0].mxu0
        %v633 = vadd.f32 0.0, %v632
        %v634 = vpop.f32.mrb[0].mxu0
        %v635 = vadd.f32 0.0, %v634
        %636 = vmatprep.mubr.bf16.mxu0 %v349
        %637 = vmatmul.mubr.bf16.gmra.mrb[0].mxu0 %v348
        %v638 = vpop.f32.mrb[0].mxu0
        %v639 = vadd.f32 0.0, %v638
        %v640 = vpop.f32.mrb[0].mxu0
        %v641 = vadd.f32 0.0, %v640
        %v642 = vpop.f32.mrb[0].mxu0
        %v643 = vadd.f32 0.0, %v642
        %v644 = vpop.f32.mrb[0].mxu0
        %v645 = vadd.f32 0.0, %v644
        %646 = vmatprep.mubr.bf16.mxu0 %v351
        %647 = vmatmul.mubr.bf16.gmra.mrb[0].mxu0 %v350
        %v648 = vpop.f32.mrb[0].mxu0
        %v649 = vadd.f32 0.0, %v648
        %v650 = vpop.f32.mrb[0].mxu0
        %v651 = vadd.f32 0.0, %v650
        %v652 = vpop.f32.mrb[0].mxu0
        %v653 = vadd.f32 0.0, %v652
        %v654 = vpop.f32.mrb[0].mxu0
        %v655 = vadd.f32 0.0, %v654
        %656 = vmatprep.mubr.bf16.mxu0 %v353
        %657 = vmatmul.mubr.bf16.gmra.mrb[0].mxu0 %v352
        %v658 = vpop.f32.mrb[0].mxu0
        %v659 = vadd.f32 0.0, %v658
        %v660 = vpop.f32.mrb[0].mxu0
        %v661 = vadd.f32 0.0, %v660
        %v662 = vpop.f32.mrb[0].mxu0
        %v663 = vadd.f32 0.0, %v662
        %v664 = vpop.f32.mrb[0].mxu0
        %v665 = vadd.f32 0.0, %v664
        %666 = vmatprep.mubr.bf16.mxu0 %v355
        %667 = vmatmul.mubr.bf16.gmra.mrb[0].mxu0 %v354
        %v668 = vpop.f32.mrb[0].mxu0
        %v669 = vadd.f32 0.0, %v668
        %v670 = vpop.f32.mrb[0].mxu0
        %v671 = vadd.f32 0.0, %v670
        %v672 = vpop.f32.mrb[0].mxu0
        %v673 = vadd.f32 0.0, %v672
        %v674 = vpop.f32.mrb[0].mxu0
        %v675 = vadd.f32 0.0, %v674
        %676 = vmatprep.mubr.bf16.mxu0 %v357
        %677 = vmatmul.mubr.bf16.gmra.mrb[0].mxu0 %v356
        %v678 = vpop.f32.mrb[0].mxu0
        %v679 = vadd.f32 0.0, %v678
        %v680 = vpop.f32.mrb[0].mxu0
        %v681 = vadd.f32 0.0, %v680
        %v682 = vpop.f32.mrb[0].mxu0
        %v683 = vadd.f32 0.0, %v682
        %v684 = vpop.f32.mrb[0].mxu0
        %v685 = vadd.f32 0.0, %v684
        %686 = vmatprep.mubr.bf16.mxu0 %v359
        %687 = vmatmul.mubr.bf16.gmra.mrb[0].mxu0 %v358
        %v688 = vpop.f32.mrb[0].mxu0
        %v689 = vadd.f32 0.0, %v688
        %v690 = vpop.f32.mrb[0].mxu0
        %v691 = vadd.f32 0.0, %v690
        %v692 = vpop.f32.mrb[0].mxu0
        %v693 = vadd.f32 0.0, %v692
        %v694 = vpop.f32.mrb[0].mxu0
        %v695 = vadd.f32 0.0, %v694
        %696 = vmatprep.mubr.bf16.mxu0 %v361
        %697 = vmatmul.mubr.bf16.gmra.mrb[0].mxu0 %v360
        %v698 = vpop.f32.mrb[0].mxu0
        %v699 = vadd.f32 0.0, %v698
        %v700 = vpop.f32.mrb[0].mxu0
        %v701 = vadd.f32 0.0, %v700
        %v702 = vpop.f32.mrb[0].mxu0
        %v703 = vadd.f32 0.0, %v702
        %v704 = vpop.f32.mrb[0].mxu0
        %v705 = vadd.f32 0.0, %v704
        %706 = vmatprep.mubr.bf16.mxu0 %v363
        %707 = vmatmul.mubr.bf16.gmra.mrb[0].mxu0 %v362
        %v708 = vpop.f32.mrb[0].mxu0
        %v709 = vadd.f32 0.0, %v708
        %v710 = vpop.f32.mrb[0].mxu0
        %v711 = vadd.f32 0.0, %v710
        %v712 = vpop.f32.mrb[0].mxu0
        %v713 = vadd.f32 0.0, %v712
        %v714 = vpop.f32.mrb[0].mxu0
        %v715 = vadd.f32 0.0, %v714
        %716 = vmatprep.mubr.bf16.mxu0 %v365
        %717 = vmatmul.mubr.bf16.gmra.mrb[0].mxu0 %v364
        %v718 = vpop.f32.mrb[0].mxu0
        %v719 = vadd.f32 0.0, %v718
        %v720 = vpop.f32.mrb[0].mxu0
        %v721 = vadd.f32 0.0, %v720
        %v722 = vpop.f32.mrb[0].mxu0
        %v723 = vadd.f32 0.0, %v722
        %v724 = vpop.f32.mrb[0].mxu0
        %v725 = vadd.f32 0.0, %v724
        %726 = vmatprep.mubr.bf16.mxu0 %v367
        %727 = vmatmul.mubr.bf16.gmra.mrb[0].mxu0 %v366
        %v728 = vpop.f32.mrb[0].mxu0
        %v729 = vadd.f32 0.0, %v728
        %v730 = vpop.f32.mrb[0].mxu0
        %v731 = vadd.f32 0.0, %v730
        %v732 = vpop.f32.mrb[0].mxu0
        %v733 = vadd.f32 0.0, %v732
        %v734 = vpop.f32.mrb[0].mxu0
        %v735 = vadd.f32 0.0, %v734
        %736 = vmatprep.mubr.bf16.mxu0 %v369
        %737 = vmatmul.mubr.bf16.gmra.mrb[0].mxu0 %v368
        %v738 = vpop.f32.mrb[0].mxu0
        %v739 = vadd.f32 0.0, %v738
        %v740 = vpop.f32.mrb[0].mxu0
        %v741 = vadd.f32 0.0, %v740
        %v742 = vpop.f32.mrb[0].mxu0
        %v743 = vadd.f32 0.0, %v742
        %v744 = vpop.f32.mrb[0].mxu0
        %v745 = vadd.f32 0.0, %v744
        %746 = vmatprep.mubr.bf16.mxu0 %v371
        %747 = vmatmul.mubr.bf16.gmra.mrb[0].mxu0 %v370
        %v748 = vpop.f32.mrb[0].mxu0
        %v749 = vadd.f32 0.0, %v748
        %v750 = vpop.f32.mrb[0].mxu0
        %v751 = vadd.f32 0.0, %v750
        %v752 = vpop.f32.mrb[0].mxu0
        %v753 = vadd.f32 0.0, %v752
        %v754 = vpop.f32.mrb[0].mxu0
        %v755 = vadd.f32 0.0, %v754
        %756 = vdwg.mxu0
        %v757 = vpack.c.bf16 %v603, %v599
        %v758 = vpack.c.bf16 %v605, %v601
        %v759 = vpack.c.bf16 %v613, %v609
        %v760 = vpack.c.bf16 %v615, %v611
        %v761 = vpack.c.bf16 %v623, %v619
        %v762 = vpack.c.bf16 %v625, %v621
        %v763 = vpack.c.bf16 %v633, %v629
        %v764 = vpack.c.bf16 %v635, %v631
        %v765 = vpack.c.bf16 %v643, %v639
        %v766 = vpack.c.bf16 %v645, %v641
        %v767 = vpack.c.bf16 %v653, %v649
        %v768 = vpack.c.bf16 %v655, %v651
        %v769 = vpack.c.bf16 %v663, %v659
        %v770 = vpack.c.bf16 %v665, %v661
        %v771 = vpack.c.bf16 %v673, %v669
        %v772 = vpack.c.bf16 %v675, %v671
        %v773 = vpack.c.bf16 %v683, %v679
        %v774 = vpack.c.bf16 %v685, %v681
        %v775 = vpack.c.bf16 %v693, %v689
        %v776 = vpack.c.bf16 %v695, %v691
        %v777 = vpack.c.bf16 %v703, %v699
        %v778 = vpack.c.bf16 %v705, %v701
        %v779 = vpack.c.bf16 %v713, %v709
        %v780 = vpack.c.bf16 %v715, %v711
        %v781 = vpack.c.bf16 %v723, %v719
        %v782 = vpack.c.bf16 %v725, %v721
        %v783 = vpack.c.bf16 %v733, %v729
        %v784 = vpack.c.bf16 %v735, %v731
        %v785 = vpack.c.bf16 %v743, %v739
        %v786 = vpack.c.bf16 %v745, %v741
        %v787 = vpack.c.bf16 %v753, %v749
        %v788 = vpack.c.bf16 %v755, %v751
        %v821 = vunpack.c.l.b16 %v757
        %v822 = vunpack.c.l.b16 %v758
        %v823 = vunpack.c.h.b16 %v757
        %v824 = vunpack.c.h.b16 %v758
        %v825 = vunpack.c.l.b16 %v759
        %v826 = vunpack.c.l.b16 %v760
        %v827 = vunpack.c.h.b16 %v759
        %v828 = vunpack.c.h.b16 %v760
        %v829 = vunpack.c.l.b16 %v761
        %v830 = vunpack.c.l.b16 %v762
        %v831 = vunpack.c.h.b16 %v761
        %v832 = vunpack.c.h.b16 %v762
        %v833 = vunpack.c.l.b16 %v763
        %v834 = vunpack.c.l.b16 %v764
        %v835 = vunpack.c.h.b16 %v763
        %v836 = vunpack.c.h.b16 %v764
        %v837 = vunpack.c.l.b16 %v765
        %v838 = vunpack.c.l.b16 %v766
        %v839 = vunpack.c.h.b16 %v765
        %v840 = vunpack.c.h.b16 %v766
        %v841 = vunpack.c.l.b16 %v767
        %v842 = vunpack.c.l.b16 %v768
        %v843 = vunpack.c.h.b16 %v767
        %v844 = vunpack.c.h.b16 %v768
        %v845 = vunpack.c.l.b16 %v769
        %v846 = vunpack.c.l.b16 %v770
        %v847 = vunpack.c.h.b16 %v769
        %v848 = vunpack.c.h.b16 %v770
        %v849 = vunpack.c.l.b16 %v771
        %v850 = vunpack.c.l.b16 %v772
        %v851 = vunpack.c.h.b16 %v771
        %v852 = vunpack.c.h.b16 %v772
        %v853 = vunpack.c.l.b16 %v773
        %v854 = vunpack.c.l.b16 %v774
        %v855 = vunpack.c.h.b16 %v773
        %v856 = vunpack.c.h.b16 %v774
        %v857 = vunpack.c.l.b16 %v775
        %v858 = vunpack.c.l.b16 %v776
        %v859 = vunpack.c.h.b16 %v775
        %v860 = vunpack.c.h.b16 %v776
        %v861 = vunpack.c.l.b16 %v777
        %v862 = vunpack.c.l.b16 %v778
        %v863 = vunpack.c.h.b16 %v777
        %v864 = vunpack.c.h.b16 %v778
        %v865 = vunpack.c.l.b16 %v779
        %v866 = vunpack.c.l.b16 %v780
        %v867 = vunpack.c.h.b16 %v779
        %v868 = vunpack.c.h.b16 %v780
        %v869 = vunpack.c.l.b16 %v781
        %v870 = vunpack.c.l.b16 %v782
        %v871 = vunpack.c.h.b16 %v781
        %v872 = vunpack.c.h.b16 %v782
        %v873 = vunpack.c.l.b16 %v783
        %v874 = vunpack.c.l.b16 %v784
        %v875 = vunpack.c.h.b16 %v783
        %v876 = vunpack.c.h.b16 %v784
        %v877 = vunpack.c.l.b16 %v785
        %v878 = vunpack.c.l.b16 %v786
        %v879 = vunpack.c.h.b16 %v785
        %v880 = vunpack.c.h.b16 %v786
        %v881 = vunpack.c.l.b16 %v787
        %v882 = vunpack.c.l.b16 %v788
        %v883 = vunpack.c.h.b16 %v787
        %v884 = vunpack.c.h.b16 %v788
        %v885 = vpack.c.b16 %v822, %v821
        %v886 = vpack.c.b16 %v824, %v823
        %v887 = vpack.c.b16 %v826, %v825
        %v888 = vpack.c.b16 %v828, %v827
        %v889 = vpack.c.b16 %v830, %v829
        %v890 = vpack.c.b16 %v832, %v831
        %v891 = vpack.c.b16 %v834, %v833
        %v892 = vpack.c.b16 %v836, %v835
        %v893 = vpack.c.b16 %v838, %v837
        %v894 = vpack.c.b16 %v840, %v839
        %v895 = vpack.c.b16 %v842, %v841
        %v896 = vpack.c.b16 %v844, %v843
        %v897 = vpack.c.b16 %v846, %v845
        %v898 = vpack.c.b16 %v848, %v847
        %v899 = vpack.c.b16 %v850, %v849
        %v900 = vpack.c.b16 %v852, %v851
        %v901 = vpack.c.b16 %v854, %v853
        %v902 = vpack.c.b16 %v856, %v855
        %v903 = vpack.c.b16 %v858, %v857
        %v904 = vpack.c.b16 %v860, %v859
        %v905 = vpack.c.b16 %v862, %v861
        %v906 = vpack.c.b16 %v864, %v863
        %v907 = vpack.c.b16 %v866, %v865
        %v908 = vpack.c.b16 %v868, %v867
        %v909 = vpack.c.b16 %v870, %v869
        %v910 = vpack.c.b16 %v872, %v871
        %v911 = vpack.c.b16 %v874, %v873
        %v912 = vpack.c.b16 %v876, %v875
        %v913 = vpack.c.b16 %v878, %v877
        %v914 = vpack.c.b16 %v880, %v879
        %v915 = vpack.c.b16 %v882, %v881
        %v916 = vpack.c.b16 %v884, %v883
        %949 = vst [vmem:[%s177] sm:$0xff] %v885
        %950 = vst [vmem:[%s177 + $0x8] sm:$0xff] %v886
        %951 = vst [vmem:[%s177 + $0x10] sm:$0xff] %v887
        %952 = vst [vmem:[%s177 + $0x18] sm:$0xff] %v888
        %953 = vst [vmem:[%s177 + $0x20] sm:$0xff] %v889
        %954 = vst [vmem:[%s177 + $0x28] sm:$0xff] %v890
        %955 = vst [vmem:[%s177 + $0x30] sm:$0xff] %v891
        %956 = vst [vmem:[%s177 + $0x38] sm:$0xff] %v892
        %957 = vst [vmem:[%s177 + $0x40] sm:$0xff] %v893
        %958 = vst [vmem:[%s177 + $0x48] sm:$0xff] %v894
        %959 = vst [vmem:[%s177 + $0x50] sm:$0xff] %v895
        %960 = vst [vmem:[%s177 + $0x58] sm:$0xff] %v896
        %961 = vst [vmem:[%s177 + $0x60] sm:$0xff] %v897
        %962 = vst [vmem:[%s177 + $0x68] sm:$0xff] %v898
        %963 = vst [vmem:[%s177 + $0x70] sm:$0xff] %v899
        %964 = vst [vmem:[%s177 + $0x78] sm:$0xff] %v900
        %965 = vst [vmem:[%s177 + $0x80] sm:$0xff] %v901
        %966 = vst [vmem:[%s177 + $0x88] sm:$0xff] %v902
        %967 = vst [vmem:[%s177 + $0x90] sm:$0xff] %v903
        %968 = vst [vmem:[%s177 + $0x98] sm:$0xff] %v904
        %969 = vst [vmem:[%s177 + $0xa0] sm:$0xff] %v905
        %970 = vst [vmem:[%s177 + $0xa8] sm:$0xff] %v906
        %971 = vst [vmem:[%s177 + $0xb0] sm:$0xff] %v907
        %972 = vst [vmem:[%s177 + $0xb8] sm:$0xff] %v908
        %973 = vst [vmem:[%s177 + $0xc0] sm:$0xff] %v909
        %974 = vst [vmem:[%s177 + $0xc8] sm:$0xff] %v910
        %975 = vst [vmem:[%s177 + $0xd0] sm:$0xff] %v911
        %976 = vst [vmem:[%s177 + $0xd8] sm:$0xff] %v912
        %977 = vst [vmem:[%s177 + $0xe0] sm:$0xff] %v913
        %978 = vst [vmem:[%s177 + $0xe8] sm:$0xff] %v914
        %979 = vst [vmem:[%s177 + $0xf0] sm:$0xff] %v915
        %980 = vst [vmem:[%s177 + $0xf8] sm:$0xff] %v916
        %s981 = sand.u32 %s75, 1
        %s982 = scalar_lea.sflag [#allocation4], %s981
        %s983 = sand.u32 %s75, 1
        %s984 = smul.addr %s983, 256
        %s985 = scalar_lea.vmem [#allocation7], %s984
        // Predicated region
        $region37: #{tpu_custom_call.1} parent=27 // pred_check
          %p986 = pneg %p85
        $region38: #{tpu_custom_call.1} parent=27 // pred_check_branch
          %988 = sbr.rel (%p986) target = $region40
        $region39: #{tpu_custom_call.1} parent=27 // pred_region
          %s989 = smul.u32 32, %s20
          %s991 = ssub.s32 4096, 4096
          %992 = vsyncadd %s982, %s991
          %s993 = smul.addr %s989, 2
          %s994 = smul.addr %s993, 64
          %s995 = scalar_lea.hbm %s2, %s994
          %s996 = sshll.u32 %s985, 4
          %s997 = int_to_ptr.vmem [resolvable:$true] %s996
          %1002 = dma.vmem_to_hbm [thread:$0]  %s997, 4096, %s995, %s982, 128, 128, 8
        $region40: #{tpu_custom_call.1} parent=27 // pred_fallthru
          _
      $region28: #{tpu_custom_call.1} parent=5 // pred_fallthru
        _
      %p1003 = scmp.le.s32.totalorder 2, %s15
      // Predicated region
      $region41: #{tpu_custom_call.1} parent=5 // pred_check
        %p1004 = pneg %p1003
      $region42: #{tpu_custom_call.1} parent=5 // pred_check_branch
        %1006 = sbr.rel (%p1004) target = $region44
      $region43: #{tpu_custom_call.1} parent=5 // pred_region
        %s1007 = ssub.s32 %s15, 2
        // Predicated region
        $region45: #{tpu_custom_call.1} parent=43 // pred_check
          %p1008 = pneg %p91
        $region46: #{tpu_custom_call.1} parent=43 // pred_check_branch
          %1010 = sbr.rel (%p1008) target = $region48
        $region47: #{tpu_custom_call.1} parent=43 // pred_region
          %s1011 = sand.u32 %s76, 1
          %s1012 = scalar_lea.sflag [#allocation4], %s1011
          %s1013 = sand.u32 %s76, 1
          %s1014 = smul.addr %s1013, 256
          %s1015 = scalar_lea.vmem [#allocation7], %s1014
          %1016 = dma.done %s1012, 4096
        $region48: #{tpu_custom_call.1} parent=43 // pred_fallthru
          _
      $region44: #{tpu_custom_call.1} parent=5 // pred_fallthru
        _
    $region6: #{tpu_custom_call.1} parent=1 // loop_footer
      %s19 = sadd.s32 1, %s15
    $region7: #{tpu_custom_call.1} parent=1 // loop_footer_branch
      %14 = sbr.rel target = $region3
    $region8: #{tpu_custom_call.1} parent=1 // loop_exit
      _
    %1017 = vsyncpa [#allocation3], 1
    %s1018 = scalar_lea.sflag [#allocation3], 1
    %1019 = vsyncpa %s1018, 1
    %1020 = vsyncpa [#allocation6], 1
    %1021 = vsyncpa [#allocation4], 1
    %s1022 = scalar_lea.sflag [#allocation4], 1
    %1023 = vsyncpa %s1022, 1

</llo_original>
